<compile_context>
chip_gen: v5e
topology: v5e:2x2
jax: 0.10.0
libtpu: 0.0.40
codegen_flags: <defaults>
</compile_context>

<pallas_src>
import functools

import jax
import jax.numpy as jnp
from jax.experimental import pallas as pl
from jax.experimental.pallas import tpu as pltpu


def _round_up(v, m):
    return (v + m - 1) // m * m


def _attn_weighted_kernel(x_ref, s_ref, o_ref, acc_ref, *, hw_total, thw, needs_mask):
    """One (TN, C, THW) tile: fused multiply + partial spatial sum into f32 accumulator."""
    hw_step = pl.program_id(1)

    @pl.when(hw_step == 0)
    def _init():
        acc_ref[...] = jnp.zeros_like(acc_ref)

    x = x_ref[...].astype(jnp.float32)        # (TN, C,  THW)
    s = s_ref[...].astype(jnp.float32)        # (TN, Cs, THW), Cs in {1, C}
    prod = x * s                              # broadcasts over channel when Cs == 1
    if needs_mask:
        # Last HW block overshoots the true spatial extent; zero the padding lanes.
        pos = hw_step * thw + jax.lax.broadcasted_iota(jnp.int32, prod.shape, 2)
        prod = jnp.where(pos < hw_total, prod, 0.0)
    acc_ref[...] += jnp.sum(prod, axis=-1)    # float32 accumulation

    @pl.when(hw_step == pl.num_programs(1) - 1)
    def _store():
        o_ref[...] = acc_ref[...].astype(o_ref.dtype)


def attention_weighted(x, scores, *, target_block_bytes=2 * 1024 * 1024):
    """x: (N, C, H, W); scores: (N, Cs, H, W) with Cs in {1, C}. Returns (N, C, 1, 1)."""
    N, C, H, W = x.shape
    Ns, Cs, Hs, Ws = scores.shape
    assert H == Hs and W == Ws, "err: h, w of x and scores must match"
    assert Ns == N, "batch dims of x and scores must match"
    assert Cs in (1, C), "scores channel dim must be 1 or C"
    HW = H * W

    out_dtype = jnp.result_type(x.dtype, scores.dtype)
    x_bytes = jnp.dtype(x.dtype).itemsize
    s_bytes = jnp.dtype(scores.dtype).itemsize

    # ---- Tile selection: ~2 MiB lane-dense x blocks (safe for v5e/v6e/v7x VMEM) ----
    # Lane (HW) tile: multiple of 128, >= 512, or the whole extent if it already fits.
    ideal_thw = max(512, target_block_bytes // max(1, C * x_bytes))
    ideal_thw = _round_up(ideal_thw, 128)
    if ideal_thw >= HW:
        thw, num_hw = HW, 1           # block == full dim: always a legal block shape
    else:
        thw = ideal_thw
        num_hw = pl.cdiv(HW, thw)
    needs_mask = (num_hw > 1) and (HW % thw != 0)

    # Batch tile: amortize per-grid-step overhead when per-batch slabs are small.
    per_n_bytes = C * thw * x_bytes
    tn = max(1, target_block_bytes // max(1, per_n_bytes))
    if tn >= N:
        tn = N
    elif tn >= 8:
        tn = (tn // 8) * 8            # keep the (TN, C) output block sublane-aligned
    num_n = pl.cdiv(N, tn)

    x2 = x.reshape(N, C, HW)
    s2 = scores.reshape(N, Cs, HW)

    # VMEM budget: double-buffered inputs + f32 accumulator + output, with headroom.
    x_blk = tn * C * thw * x_bytes
    s_blk = tn * Cs * thw * s_bytes
    need = 2 * (x_blk + s_blk) + tn * C * (4 + 2 * jnp.dtype(out_dtype).itemsize)
    vmem_limit = int(min(64 * 1024 * 1024, max(16 * 1024 * 1024, 2 * need)))

    kernel = functools.partial(
        _attn_weighted_kernel, hw_total=HW, thw=thw, needs_mask=needs_mask
    )

    out = pl.pallas_call(
        kernel,
        out_shape=jax.ShapeDtypeStruct((N, C), out_dtype),
        grid_spec=pltpu.PrefetchScalarGridSpec(
            num_scalar_prefetch=0,
            grid=(num_n, num_hw),                        # reduction (HW) axis last
            in_specs=[
                pl.BlockSpec((tn, C, thw), lambda n, h: (n, 0, h)),
                pl.BlockSpec((tn, Cs, thw), lambda n, h: (n, 0, h)),
            ],
            out_specs=pl.BlockSpec((tn, C), lambda n, h: (n, 0)),
            scratch_shapes=[pltpu.VMEM((tn, C), jnp.float32)],
        ),
        compiler_params=pltpu.CompilerParams(
            dimension_semantics=("parallel", "arbitrary"),
            vmem_limit_bytes=vmem_limit,
        ),
    )(x2, s2)

    return out.reshape(N, C, 1, 1)


if __name__ == "__main__":
    key = jax.random.PRNGKey(0)
    k1, k2, k3, k4, k5 = jax.random.split(key, 5)

    # Case 1: single-channel score map broadcast over C (typical attention pooling).
    N, C, H, W = 2, 4, 16, 16
    x = jax.random.normal(k1, (N, C, H, W), dtype=jnp.float32)
    scores = jax.nn.softmax(
        jax.random.normal(k2, (N, 1, H * W), dtype=jnp.float32), axis=-1
    ).reshape(N, 1, H, W)
    out = jax.block_until_ready(attention_weighted(x, scores))
    ref = jnp.sum((x * scores).reshape(N, C, H * W), axis=2).reshape(N, C, 1, 1)
    assert out.shape == (N, C, 1, 1)
    assert jnp.allclose(out, ref, atol=1e-5, rtol=1e-5)

    # Case 2: per-channel score maps (Cs == C).
    scores_c = jax.random.normal(k3, (N, C, H, W), dtype=jnp.float32)
    out_c = jax.block_until_ready(attention_weighted(x, scores_c))
    ref_c = jnp.sum((x * scores_c).reshape(N, C, H * W), axis=2).reshape(N, C, 1, 1)
    assert jnp.allclose(out_c, ref_c, atol=1e-5, rtol=1e-5)

    # Case 3: larger shape exercising the tiled (multi-step) spatial reduction path.
    N2, C2, H2, W2 = 2, 64, 128, 128
    xb = jax.random.normal(k4, (N2, C2, H2, W2), dtype=jnp.float32)
    sb = jax.nn.softmax(
        jax.random.normal(k5, (N2, 1, H2 * W2), dtype=jnp.float32), axis=-1
    ).reshape(N2, 1, H2, W2)
    out_b = jax.block_until_ready(attention_weighted(xb, sb))
    ref_b = jnp.sum((xb * sb).reshape(N2, C2, H2 * W2), axis=2).reshape(N2, C2, 1, 1)
    assert jnp.allclose(out_b, ref_b, atol=1e-4, rtol=1e-4)

    print("KERNEL_OK")
</pallas_src>

<mosaic_0001>
module attributes {stable_mosaic.version = 11 : i64} {
  func.func @_attn_weighted_kernel(%arg0: i32, %arg1: i32, %arg2: memref<2x4x256xf32, #tpu.memory_space<vmem>>, %arg3: memref<2x1x256xf32, #tpu.memory_space<vmem>>, %arg4: memref<2x4xf32, #tpu.memory_space<vmem>>, %arg5: memref<2x4xf32, #tpu.memory_space<vmem>>) attributes {dimension_semantics = [#tpu.dimension_semantics<parallel>, #tpu.dimension_semantics<arbitrary>], iteration_bounds = array<i64: 1, 1>, scalar_prefetch = 0 : i64, scratch_operands = 1 : i64, tpu.core_type = #tpu.core_type<tc>, window_params = [{transform_indices = @transform_0, window_bounds = array<i64: 2, 4, 256>}, {transform_indices = @transform_1, window_bounds = array<i64: 2, 1, 256>}, {transform_indices = @transform_2, window_bounds = array<i64: 2, 4>}]} {
    %c0_i32 = arith.constant 0 : i32
    %0 = arith.cmpi eq, %arg1, %c0_i32 : i32
    %1 = arith.extui %0 : i1 to i32
    %c0_i32_0 = arith.constant 0 : i32
    %2 = arith.cmpi ne, %1, %c0_i32_0 : i32
    scf.if %2 {
      %cst_12 = arith.constant 0.000000e+00 : f32
      %14 = vector.broadcast %cst_12 : f32 to vector<2x4xf32>
      %c0_13 = arith.constant 0 : index
      %c0_14 = arith.constant 0 : index
      %15 = vector.load %arg5[%c0_13, %c0_14] : memref<2x4xf32, #tpu.memory_space<vmem>>, vector<2x4xf32>
      tpu.vector_store %arg5[%c0_13, %c0_14], %14 {strides = array<i32>} : memref<2x4xf32, #tpu.memory_space<vmem>>, vector<2x4xf32>,
    } else {
    }
    %c0 = arith.constant 0 : index
    %c0_1 = arith.constant 0 : index
    %c0_2 = arith.constant 0 : index
    %3 = vector.load %arg2[%c0, %c0_1, %c0_2] : memref<2x4x256xf32, #tpu.memory_space<vmem>>, vector<2x4x256xf32>
    %c0_3 = arith.constant 0 : index
    %c0_4 = arith.constant 0 : index
    %c0_5 = arith.constant 0 : index
    %4 = vector.load %arg3[%c0_3, %c0_4, %c0_5] : memref<2x1x256xf32, #tpu.memory_space<vmem>>, vector<2x1x256xf32>
    %5 = vector.broadcast %4 : vector<2x1x256xf32> to vector<2x4x256xf32>
    %6 = arith.mulf %3, %5 : vector<2x4x256xf32>
    %c0_6 = arith.constant 0 : index
    %c0_7 = arith.constant 0 : index
    %7 = vector.load %arg5[%c0_6, %c0_7] : memref<2x4xf32, #tpu.memory_space<vmem>>, vector<2x4xf32>
    %cst = arith.constant dense<0.000000e+00> : vector<2x4xf32>
    %8 = vector.multi_reduction <add>, %6, %cst [2] : vector<2x4x256xf32> to vector<2x4xf32>
    %9 = arith.addf %7, %8 : vector<2x4xf32>
    %c0_8 = arith.constant 0 : index
    %c0_9 = arith.constant 0 : index
    %10 = vector.load %arg5[%c0_8, %c0_9] : memref<2x4xf32, #tpu.memory_space<vmem>>, vector<2x4xf32>
    tpu.vector_store %arg5[%c0_8, %c0_9], %9 {strides = array<i32>} : memref<2x4xf32, #tpu.memory_space<vmem>>, vector<2x4xf32>,
    %c0_i32_10 = arith.constant 0 : i32
    %11 = arith.cmpi eq, %arg1, %c0_i32_10 : i32
    %12 = arith.extui %11 : i1 to i32
    %c0_i32_11 = arith.constant 0 : i32
    %13 = arith.cmpi ne, %12, %c0_i32_11 : i32
    scf.if %13 {
      %c0_12 = arith.constant 0 : index
      %c0_13 = arith.constant 0 : index
      %14 = vector.load %arg5[%c0_12, %c0_13] : memref<2x4xf32, #tpu.memory_space<vmem>>, vector<2x4xf32>
      %c0_14 = arith.constant 0 : index
      %c0_15 = arith.constant 0 : index
      %15 = vector.load %arg4[%c0_14, %c0_15] : memref<2x4xf32, #tpu.memory_space<vmem>>, vector<2x4xf32>
      tpu.vector_store %arg4[%c0_14, %c0_15], %14 {strides = array<i32>} : memref<2x4xf32, #tpu.memory_space<vmem>>, vector<2x4xf32>,
    } else {
    }
    return
  }
  func.func @transform_0(%arg0: i32, %arg1: i32) -> (i32, i32, i32) {
    %c0_i32 = arith.constant 0 : i32
    %c0_i32_0 = arith.constant 0 : i32
    return %arg0, %c0_i32, %arg1 : i32, i32, i32
  }
  func.func @transform_1(%arg0: i32, %arg1: i32) -> (i32, i32, i32) {
    %c0_i32 = arith.constant 0 : i32
    %c0_i32_0 = arith.constant 0 : i32
    return %arg0, %c0_i32, %arg1 : i32, i32, i32
  }
  func.func @transform_2(%arg0: i32, %arg1: i32) -> (i32, i32) {
    %c0_i32 = arith.constant 0 : i32
    %c0_i32_0 = arith.constant 0 : i32
    return %arg0, %c0_i32 : i32, i32
  }
}

</mosaic_0001>

<llo_original>
// kernel: tpu_custom_call.1
$region0: #{tpu_custom_call.1}
  #allocation0 [shape = 'u32[]', space=smem, size = 0x4, offset = 0x4, fixed_abs, tag = 'smem constant byte address 0x4 - core index']
  #allocation1 [shape = 'u32[72,128]{1,0:T(1,128)}', space=vmem, size = 0x9000, scoped, tag = 'internal scratch']
  #allocation2 [shape = 'f32[2,4]{1,0:T(2,128)}', space=vmem, size = 0x400, scoped, tag = 'scratch operand']
  %s0 = inlined_call_operand.hbm [shape: f32[2,4,256], index: 0, kind: input, shape index: {}]
  %s1 = inlined_call_operand.hbm [shape: f32[2,1,256], index: 1, kind: input, shape index: {}]
  %s2 = inlined_call_operand.hbm [shape: f32[2,4], index: 2, kind: output, shape index: {}]
  %s3 = sld [smem:[#allocation0]]
  $region34: #{tpu_custom_call.1} parent=0
    _
  %s5 = ssub.s32 1, %s3
  %s6 = scalar_select 0, %s5, %s3
  $region1: #{tpu_custom_call.1} parent=0
    #allocation3 [shape = 'u8[8192]{0}', space=vmem, size = 0x2000, scoped, tag = 'input window, operand 0, single buffered']
    #allocation4 [shape = 's32[1]{0}', space=sflag, size = 0x4, scoped, tag = 'scoped memory for tpu_custom_call.1']
    #allocation5 [shape = 's32[1]{0}', space=sflag, size = 0x4, scoped, tag = 'scoped memory for tpu_custom_call.1']
    #allocation6 [shape = 'u8[2048]{0}', space=vmem, size = 0x800, scoped, tag = 'input window, operand 1, single buffered']
    #allocation7 [shape = 's32[1]{0}', space=sflag, size = 0x4, scoped, tag = 'scoped memory for tpu_custom_call.1']
    #allocation8 [shape = 'u8[1024]{0}', space=vmem, size = 0x400, scoped, tag = 'output window, operand 0, single buffered']
    %7 = vsyncpa [#allocation4], 0
    %8 = vsyncpa [#allocation7], 0
    %9 = vsyncpa [#allocation5], 0
    // Predicated region
    $region2: #{tpu_custom_call.1} parent=1 // pred_check
      _
    $region3: #{tpu_custom_call.1} parent=1 // pred_check_branch
      %11 = sbr.rel (0) target = $region5
    $region4: #{tpu_custom_call.1} parent=1 // pred_region
      %13 = vsyncadd [#allocation4], 0
      %s14 = sshll.u32 %s0, 4
      %s15 = int_to_ptr.hbm [resolvable:$true] %s14
      %s16 = sshll.u32 [#allocation3], 4
      %s17 = int_to_ptr.vmem [resolvable:$true] %s16
      %22 = dma.hbm_to_vmem [thread:$0]  %s15, 256, %s17, [#allocation4], 128, 128, 8
    $region5: #{tpu_custom_call.1} parent=1 // pred_fallthru
      _
    // Predicated region
    $region6: #{tpu_custom_call.1} parent=1 // pred_check
      _
    $region7: #{tpu_custom_call.1} parent=1 // pred_check_branch
      %24 = sbr.rel (0) target = $region9
    $region8: #{tpu_custom_call.1} parent=1 // pred_region
      %26 = vsyncadd [#allocation7], 0
      %s27 = sshll.u32 %s1, 4
      %s28 = int_to_ptr.hbm [resolvable:$true] %s27
      %s29 = sshll.u32 [#allocation6], 4
      %s30 = int_to_ptr.vmem [resolvable:$true] %s29
      %35 = dma.hbm_to_vmem [thread:$0]  %s28, 64, %s30, [#allocation7], 32, 32, 2
    $region9: #{tpu_custom_call.1} parent=1 // pred_fallthru
      _
    // Predicated region
    $region10: #{tpu_custom_call.1} parent=1 // pred_check
      _
    $region11: #{tpu_custom_call.1} parent=1 // pred_check_branch
      %37 = sbr.rel (0) target = $region13
    $region12: #{tpu_custom_call.1} parent=1 // pred_region
      %39 = dma.done [#allocation4], 256
    $region13: #{tpu_custom_call.1} parent=1 // pred_fallthru
      _
    // Predicated region
    $region14: #{tpu_custom_call.1} parent=1 // pred_check
      _
    $region15: #{tpu_custom_call.1} parent=1 // pred_check_branch
      %41 = sbr.rel (0) target = $region17
    $region16: #{tpu_custom_call.1} parent=1 // pred_region
      %43 = dma.done [#allocation7], 64
    $region17: #{tpu_custom_call.1} parent=1 // pred_fallthru
      _
    %p44 = scmp.eq.s32.totalorder 0, 0
    // Predicated region
    $region18: #{tpu_custom_call.1} parent=1 // pred_check
      %p45 = pneg %p44
    $region19: #{tpu_custom_call.1} parent=1 // pred_check_branch
      %47 = sbr.rel (%p45) target = $region21
    $region20: #{tpu_custom_call.1} parent=1 // pred_region
      %vm48 = vcmask 25600
      %49 = vst.msk [vmem:[#allocation2] sm:$0x3] %vm48, 0.0
    $region21: #{tpu_custom_call.1} parent=1 // pred_fallthru
      _
    %v50 = vld [vmem:[#allocation3] sm:$0xff]
    %v51 = vld [vmem:[#allocation3 + $0x8] sm:$0xff]
    %v52 = vld [vmem:[#allocation6] sm:$0x3]
    %v53 = vld [vmem:[#allocation6 + $0x2] sm:$0x3]
    %v56 = vperm.slane %v52, 0
    %v57 = vperm.slane %v52, 1
    %v58 = vperm.slane %v53, 0
    %v59 = vperm.slane %v53, 1
    %v60 = vrot.slane %v57, 4
    %v61 = vrot.slane %v59, 4
    %vm62 = vcmask 1043456
    %v63 = vsel %vm62, %v56, %v60
    %v64 = vsel %vm62, %v58, %v61
    %v67 = vmul.f32 %v50, %v63
    %v68 = vmul.f32 %v51, %v64
    %v69 = vld [vmem:[#allocation2] sm:$0x3]
    %72 = vst [vmem:[#allocation1] ss:$2 sm:$0xff] %v67
    %v73 = vld.sshfl [vmem:[#allocation1] sm:$0xff pattern:$0x75316420]
    %v74 = vld.sshfl [vmem:[#allocation1 + $0x8] sm:$0xff pattern:$0x75316420]
    %s75 = scalar_lea.vmem [#allocation1], 16
    %76 = vst [vmem:[%s75] ss:$2 sm:$0xff] %v68
    %v77 = vld.sshfl [vmem:[#allocation1 + $0x10] sm:$0xff pattern:$0x75316420]
    %v78 = vld.sshfl [vmem:[#allocation1 + $0x18] sm:$0xff pattern:$0x75316420]
    %v83 = vsel %vm62, %v73, 0.0
    %v84 = vsel %vm62, %v74, 0.0
    %v85 = vadd.f32 %v83, %v84
    %86 = vadd.xlane.f32.xlu0 %v85
    %v87 = vpop.xlane.xlu0 %86
    %v88 = vsel %vm62, %v77, 0.0
    %v89 = vsel %vm62, %v78, 0.0
    %v90 = vadd.f32 %v88, %v89
    %91 = vadd.xlane.f32.xlu0 %v90
    %v92 = vpop.xlane.xlu0 %91
    %v95 = vlaneseq
    %v96 = vand.u32 %v95, 127
    %v97 = vperm.slane %v87, %v96
    %v98 = vperm.slane %v92, %v96
    %vm99 = vcmask 1041409
    %v100 = vsel %vm99, %v98, %v97
    %v102 = vadd.f32 %v69, %v100
    %vm103 = vcmask 25600
    %104 = vst.msk [vmem:[#allocation2] sm:$0x3] %vm103, %v102
    // Predicated region
    $region22: #{tpu_custom_call.1} parent=1 // pred_check
      %p105 = pneg %p44
    $region23: #{tpu_custom_call.1} parent=1 // pred_check_branch
      %107 = sbr.rel (%p105) target = $region25
    $region24: #{tpu_custom_call.1} parent=1 // pred_region
      %v108 = vld [vmem:[#allocation2] sm:$0x3]
      %109 = vst.msk [vmem:[#allocation8] sm:$0x3] %vm103, %v108
    $region25: #{tpu_custom_call.1} parent=1 // pred_fallthru
      _
    // Predicated region
    $region26: #{tpu_custom_call.1} parent=1 // pred_check
      _
    $region27: #{tpu_custom_call.1} parent=1 // pred_check_branch
      %111 = sbr.rel (0) target = $region29
    $region28: #{tpu_custom_call.1} parent=1 // pred_region
      %113 = vsyncadd [#allocation5], 0
      %s115 = sshll.u32 [#allocation8], 4
      %s116 = int_to_ptr.vmem [resolvable:$true] %s115
      %s117 = sshll.u32 %s2, 4
      %s118 = int_to_ptr.hbm [resolvable:$true] %s117
      %120 = dma.vmem_to_hbm [thread:$0]  %s116, 32, %s118, [#allocation5]
    $region29: #{tpu_custom_call.1} parent=1 // pred_fallthru
      _
    // Predicated region
    $region30: #{tpu_custom_call.1} parent=1 // pred_check
      _
    $region31: #{tpu_custom_call.1} parent=1 // pred_check_branch
      %122 = sbr.rel (0) target = $region33
    $region32: #{tpu_custom_call.1} parent=1 // pred_region
      %124 = dma.done [#allocation5], 32
    $region33: #{tpu_custom_call.1} parent=1 // pred_fallthru
      _
    %125 = vsyncpa [#allocation4], 1
    %126 = vsyncpa [#allocation7], 1
    %127 = vsyncpa [#allocation5], 1

</llo_original>
